<compile_context>
chip_gen: v7x
topology: tpu7x:2x2x1
jax: 0.10.0
libtpu: 0.0.40
codegen_flags: <defaults>
</compile_context>

<pallas_src>
import functools

import jax
import jax.numpy as jnp
import numpy as np
from jax.experimental import pallas as pl
from jax.experimental.pallas import tpu as pltpu

EMBED = 512          # embed_lens in the module
TOPK = 9
SCALE_ = 14.0 ** 0.5


def _kla_kernel(x_ref, qc_ref, wvp_ref, bp_ref, o_ref, *, topk, b_blk):
    qc = qc_ref[...]            # (M, C) f32, sqrt(14) already folded in
    wvp = wvp_ref[...]          # (C, C) bf16  (= Wv @ Wp)
    bp = bp_ref[...]            # (1, C) f32

    int_min = jnp.int32(jnp.iinfo(jnp.int32).min)
    lane_mask = jnp.int32(0x7FFFFFFF)

    # b_blk is a tiny static count (<= B); a Python loop is fine here.
    for i in range(b_blk):
        x = x_ref[i]                            # (N, C) f32
        x_bf = x.astype(jnp.bfloat16)           # bf16 copy for the value path

        # scores: (M, N) = Qc @ x^T  (contract over C, no explicit transpose).
        # Kept in f32 so the top-k ordering is faithful to the f32 reference.
        attn = jax.lax.dot_general(
            qc, x, (((1,), (1,)), ((), ())),
            preferred_element_type=jnp.float32)                  # (M, N)
        n_tok = attn.shape[-1]

        # ---- top-k mask: ONE cross-lane reduction per iteration ------------
        # Map f32 -> order-preserving signed int32 key, then repeat
        # (max, mask) topk times.  Exact for distinct values; exact float
        # duplicates of a row maximum would all be kept in the same iteration
        # (measure-zero for continuous inputs).
        bits = pltpu.bitcast(attn, jnp.int32)
        key = bits ^ ((bits >> 31) & lane_mask)
        kept = jnp.zeros_like(attn)
        rem = key
        for _ in range(topk):
            mkey = jnp.max(rem, axis=-1, keepdims=True)   # single XLU reduction
            hit = rem == mkey
            kept = jnp.where(hit, attn, kept)
            rem = jnp.where(hit, int_min, rem)

        # attn_ = attn_ / ||attn_||_2 * N   (guarded against all-zero rows)
        norm = jnp.sqrt(jnp.sum(kept * kept, axis=-1, keepdims=True))
        attn_n = kept / jnp.maximum(norm, jnp.float32(1e-30)) * jnp.float32(n_tok)

        # softmax over the full row (zeros at non-top-k positions participate)
        mx = jnp.max(attn_n, axis=-1, keepdims=True)
        e = jnp.exp(attn_n - mx)
        attn_s = e * pl.reciprocal(jnp.sum(e, axis=-1, keepdims=True),
                                   approx=False)

        # value path: out = attn_s @ x @ (Wv @ Wp) + bp
        # bf16 MXU inputs, f32 accumulation (v6e/v7x native MXU path).
        h = jnp.dot(attn_s.astype(jnp.bfloat16), x_bf,
                    preferred_element_type=jnp.float32)          # (M, C)
        out = jnp.dot(h.astype(jnp.bfloat16), wvp,
                      preferred_element_type=jnp.float32) + bp   # (M, C)

        # NOTE: C=32 < 128 lanes -> masked store; a lane-dense (B, M*C) layout
        # would need an in-kernel flatten relayout that costs as much here.
        o_ref[i] = out.astype(o_ref.dtype)


@functools.partial(jax.jit, static_argnames=("topk",))
def kla_forward(x, q, wk, wv, wp, bp, *, topk=TOPK):
    """x: (B,N,C) f32; q: (M,E); wk/wv: (C,E); wp: (E,C); bp: (C,)."""
    B, N, C = x.shape
    M, E = q.shape
    assert E == EMBED and wk.shape == (C, E) and wv.shape == (C, E)
    assert wp.shape == (E, C) and bp.shape == (C,)
    assert topk <= N, f"topk={topk} must be <= N={N}"

    hp = jax.lax.Precision.HIGHEST
    # One-off, batch-invariant precompute (folds the 512-wide projections and
    # the sqrt(14) scale out of the per-batch path).
    qc = jnp.dot(q, wk.T, precision=hp) * jnp.float32(SCALE_)        # (M, C)
    wvp = jnp.dot(wv, wp, precision=hp).astype(jnp.bfloat16)         # (C, C)
    bp2 = bp.reshape(1, C).astype(jnp.float32)

    # Grid: at most 2 "parallel" steps with the batch folded into the block.
    # Two steps feed both v7x TensorCores; on v5e/v6e it is only ~0.7 us of
    # per-step overhead total.
    if B >= 2 and B % 2 == 0:
        num_steps, b_blk = 2, B // 2
    else:
        num_steps, b_blk = 1, B

    # TODO(synk): for production-sized N/C, add an N-reduction grid axis and
    # pltpu.CompilerParams(vmem_limit_bytes=...) so the working set also fits
    # v7x's 64 MiB VMEM; irrelevant at these toy shapes.
    kernel = functools.partial(_kla_kernel, topk=topk, b_blk=b_blk)
    return pl.pallas_call(
        kernel,
        out_shape=jax.ShapeDtypeStruct((B, M, C), jnp.float32),
        grid_spec=pltpu.PrefetchScalarGridSpec(
            num_scalar_prefetch=0,
            grid=(num_steps,),
            in_specs=[
                pl.BlockSpec((b_blk, N, C), lambda s: (s, 0, 0)),   # x block
                pl.BlockSpec((M, C), lambda s: (0, 0)),             # Qc (shared)
                pl.BlockSpec((C, C), lambda s: (0, 0)),             # Wvp (shared)
                pl.BlockSpec((1, C), lambda s: (0, 0)),             # bias
            ],
            out_specs=pl.BlockSpec((b_blk, M, C), lambda s: (s, 0, 0)),
        ),
        compiler_params=pltpu.CompilerParams(
            dimension_semantics=("parallel",)),
    )(x, qc, wvp, bp2)


def kla_reference(x, q, wk, wv, wp, bp, *, topk=TOPK):
    """Plain-JAX reference mirroring the PyTorch code."""
    B, N, C = x.shape
    hp = jax.lax.Precision.HIGHEST
    k = jnp.einsum("bnc,ce->bne", x, wk, precision=hp)
    v = jnp.einsum("bnc,ce->bne", x, wv, precision=hp)
    attn = jnp.einsum("me,bne->bmn", q, k, precision=hp) * SCALE_
    vals, idx = jax.lax.top_k(attn, topk)
    attn_ = jnp.zeros_like(attn)
    b_i = jnp.arange(B)[:, None, None]
    m_i = jnp.arange(attn.shape[1])[None, :, None]
    attn_ = attn_.at[b_i, m_i, idx].set(vals)
    attn_ = attn_ / jnp.linalg.norm(attn_, axis=-1, keepdims=True) * N
    attn_ = jax.nn.softmax(attn_, axis=-1)
    out = jnp.einsum("bmn,bne->bme", attn_, v, precision=hp)
    out = jnp.einsum("bme,ec->bmc", out, wp, precision=hp) + bp[None, None, :]
    return out


if __name__ == "__main__":
    key = jax.random.PRNGKey(0)
    B, N, C = 2, 16, 32          # batch, tokens, dim
    M = 8                        # class_num
    E = EMBED                    # e_d must equal embed_lens = 512

    k0, k1, k2, k3, k4, k5 = jax.random.split(key, 6)
    x = jax.random.normal(k0, (B, N, C), dtype=jnp.float32)
    qcls = jax.random.normal(k1, (M, E), dtype=jnp.float32)

    # Deterministic parameter init (Linear-like scaling), stored as (in, out).
    wk = jax.random.normal(k2, (C, E), dtype=jnp.float32) * (1.0 / np.sqrt(C))
    wv = jax.random.normal(k3, (C, E), dtype=jnp.float32) * (1.0 / np.sqrt(C))
    wp = jax.random.normal(k4, (E, C), dtype=jnp.float32) * (1.0 / np.sqrt(E))
    bp = jax.random.normal(k5, (C,), dtype=jnp.float32) * 0.01

    out = jax.block_until_ready(kla_forward(x, qcls, wk, wv, wp, bp))
    ref = jax.block_until_ready(kla_reference(x, qcls, wk, wv, wp, bp))

    # Tolerance is dominated by the bf16 value-path matmuls (v6e/v7x MXU
    # inputs); the score path / top-k selection stays f32-exact vs the ref.
    np.testing.assert_allclose(np.asarray(out), np.asarray(ref),
                               rtol=3e-3, atol=3e-2)
    print("KERNEL_OK")
</pallas_src>

<mosaic_0001>
module attributes {stable_mosaic.version = 11 : i64} {
  func.func @_kla_kernel(%arg0: i32, %arg1: memref<1x16x32xf32, #tpu.memory_space<vmem>>, %arg2: memref<8x32xf32, #tpu.memory_space<vmem>>, %arg3: memref<32x32xbf16, #tpu.memory_space<vmem>>, %arg4: memref<1x32xf32, #tpu.memory_space<vmem>>, %arg5: memref<1x8x32xf32, #tpu.memory_space<vmem>>) attributes {dimension_semantics = [#tpu.dimension_semantics<parallel>], iteration_bounds = array<i64: 2>, scalar_prefetch = 0 : i64, scratch_operands = 0 : i64, tpu.core_type = #tpu.core_type<tc>, window_params = [{transform_indices = @transform_0, window_bounds = array<i64: 1, 16, 32>}, {pipeline_mode = #tpu.pipeline_mode<synchronous>, transform_indices = @transform_1, window_bounds = array<i64: 8, 32>}, {pipeline_mode = #tpu.pipeline_mode<synchronous>, transform_indices = @transform_2, window_bounds = array<i64: 32, 32>}, {pipeline_mode = #tpu.pipeline_mode<synchronous>, transform_indices = @transform_3, window_bounds = array<i64: 1, 32>}, {transform_indices = @transform_4, window_bounds = array<i64: 1, 8, 32>}]} {
    %c0 = arith.constant 0 : index
    %c0_0 = arith.constant 0 : index
    %0 = vector.load %arg2[%c0, %c0_0] : memref<8x32xf32, #tpu.memory_space<vmem>>, vector<8x32xf32>
    %c0_1 = arith.constant 0 : index
    %c0_2 = arith.constant 0 : index
    %1 = vector.load %arg3[%c0_1, %c0_2] : memref<32x32xbf16, #tpu.memory_space<vmem>>, vector<32x32xbf16>
    %c0_3 = arith.constant 0 : index
    %c0_4 = arith.constant 0 : index
    %2 = vector.load %arg4[%c0_3, %c0_4] : memref<1x32xf32, #tpu.memory_space<vmem>>, vector<1x32xf32>
    %c0_5 = arith.constant 0 : index
    %c0_6 = arith.constant 0 : index
    %c0_7 = arith.constant 0 : index
    %3 = vector.load %arg1[%c0_5, %c0_6, %c0_7] : memref<1x16x32xf32, #tpu.memory_space<vmem>>, vector<1x16x32xf32>
    %4 = vector.shape_cast %3 : vector<1x16x32xf32> to vector<16x32xf32>
    %5 = arith.truncf %4 : vector<16x32xf32> to vector<16x32xbf16>
    %cst = arith.constant dense<0.000000e+00> : vector<8x16xf32>
    %6 = tpu.matmul %0, %4, %cst {dimension_numbers = #tpu.dot_dimension_numbers<[1], [1], [0], [0], [0, 0, 1, 0], [], []>} : vector<8x32xf32>, vector<16x32xf32>, vector<8x16xf32> -> vector<8x16xf32>
    %7 = tpu.bitcast %6 : vector<8x16xf32> -> vector<8x16xi32>
    %c31_i32 = arith.constant 31 : i32
    %8 = vector.broadcast %c31_i32 : i32 to vector<8x16xi32>
    %9 = arith.shrsi %7, %8 : vector<8x16xi32>
    %c2147483647_i32 = arith.constant 2147483647 : i32
    %10 = vector.broadcast %c2147483647_i32 : i32 to vector<8x16xi32>
    %11 = arith.andi %9, %10 : vector<8x16xi32>
    %12 = arith.xori %7, %11 : vector<8x16xi32>
    %cst_8 = arith.constant 0.000000e+00 : f32
    %13 = vector.broadcast %cst_8 : f32 to vector<8x16xf32>
    %cst_9 = arith.constant dense<-2147483648> : vector<8xi32>
    %14 = vector.multi_reduction <maxsi>, %12, %cst_9 [1] : vector<8x16xi32> to vector<8xi32>
    %15 = vector.shape_cast %14 : vector<8xi32> to vector<8x1xi32>
    %16 = vector.broadcast %15 : vector<8x1xi32> to vector<8x16xi32>
    %17 = arith.cmpi eq, %12, %16 : vector<8x16xi32>
    %18 = arith.select %17, %6, %13 : vector<8x16xi1>, vector<8x16xf32>
    %c-2147483648_i32 = arith.constant -2147483648 : i32
    %19 = vector.broadcast %c-2147483648_i32 : i32 to vector<8x16xi32>
    %20 = arith.select %17, %19, %12 : vector<8x16xi1>, vector<8x16xi32>
    %cst_10 = arith.constant dense<-2147483648> : vector<8xi32>
    %21 = vector.multi_reduction <maxsi>, %20, %cst_10 [1] : vector<8x16xi32> to vector<8xi32>
    %22 = vector.shape_cast %21 : vector<8xi32> to vector<8x1xi32>
    %23 = vector.broadcast %22 : vector<8x1xi32> to vector<8x16xi32>
    %24 = arith.cmpi eq, %20, %23 : vector<8x16xi32>
    %25 = arith.select %24, %6, %18 : vector<8x16xi1>, vector<8x16xf32>
    %c-2147483648_i32_11 = arith.constant -2147483648 : i32
    %26 = vector.broadcast %c-2147483648_i32_11 : i32 to vector<8x16xi32>
    %27 = arith.select %24, %26, %20 : vector<8x16xi1>, vector<8x16xi32>
    %cst_12 = arith.constant dense<-2147483648> : vector<8xi32>
    %28 = vector.multi_reduction <maxsi>, %27, %cst_12 [1] : vector<8x16xi32> to vector<8xi32>
    %29 = vector.shape_cast %28 : vector<8xi32> to vector<8x1xi32>
    %30 = vector.broadcast %29 : vector<8x1xi32> to vector<8x16xi32>
    %31 = arith.cmpi eq, %27, %30 : vector<8x16xi32>
    %32 = arith.select %31, %6, %25 : vector<8x16xi1>, vector<8x16xf32>
    %c-2147483648_i32_13 = arith.constant -2147483648 : i32
    %33 = vector.broadcast %c-2147483648_i32_13 : i32 to vector<8x16xi32>
    %34 = arith.select %31, %33, %27 : vector<8x16xi1>, vector<8x16xi32>
    %cst_14 = arith.constant dense<-2147483648> : vector<8xi32>
    %35 = vector.multi_reduction <maxsi>, %34, %cst_14 [1] : vector<8x16xi32> to vector<8xi32>
    %36 = vector.shape_cast %35 : vector<8xi32> to vector<8x1xi32>
    %37 = vector.broadcast %36 : vector<8x1xi32> to vector<8x16xi32>
    %38 = arith.cmpi eq, %34, %37 : vector<8x16xi32>
    %39 = arith.select %38, %6, %32 : vector<8x16xi1>, vector<8x16xf32>
    %c-2147483648_i32_15 = arith.constant -2147483648 : i32
    %40 = vector.broadcast %c-2147483648_i32_15 : i32 to vector<8x16xi32>
    %41 = arith.select %38, %40, %34 : vector<8x16xi1>, vector<8x16xi32>
    %cst_16 = arith.constant dense<-2147483648> : vector<8xi32>
    %42 = vector.multi_reduction <maxsi>, %41, %cst_16 [1] : vector<8x16xi32> to vector<8xi32>
    %43 = vector.shape_cast %42 : vector<8xi32> to vector<8x1xi32>
    %44 = vector.broadcast %43 : vector<8x1xi32> to vector<8x16xi32>
    %45 = arith.cmpi eq, %41, %44 : vector<8x16xi32>
    %46 = arith.select %45, %6, %39 : vector<8x16xi1>, vector<8x16xf32>
    %c-2147483648_i32_17 = arith.constant -2147483648 : i32
    %47 = vector.broadcast %c-2147483648_i32_17 : i32 to vector<8x16xi32>
    %48 = arith.select %45, %47, %41 : vector<8x16xi1>, vector<8x16xi32>
    %cst_18 = arith.constant dense<-2147483648> : vector<8xi32>
    %49 = vector.multi_reduction <maxsi>, %48, %cst_18 [1] : vector<8x16xi32> to vector<8xi32>
    %50 = vector.shape_cast %49 : vector<8xi32> to vector<8x1xi32>
    %51 = vector.broadcast %50 : vector<8x1xi32> to vector<8x16xi32>
    %52 = arith.cmpi eq, %48, %51 : vector<8x16xi32>
    %53 = arith.select %52, %6, %46 : vector<8x16xi1>, vector<8x16xf32>
    %c-2147483648_i32_19 = arith.constant -2147483648 : i32
    %54 = vector.broadcast %c-2147483648_i32_19 : i32 to vector<8x16xi32>
    %55 = arith.select %52, %54, %48 : vector<8x16xi1>, vector<8x16xi32>
    %cst_20 = arith.constant dense<-2147483648> : vector<8xi32>
    %56 = vector.multi_reduction <maxsi>, %55, %cst_20 [1] : vector<8x16xi32> to vector<8xi32>
    %57 = vector.shape_cast %56 : vector<8xi32> to vector<8x1xi32>
    %58 = vector.broadcast %57 : vector<8x1xi32> to vector<8x16xi32>
    %59 = arith.cmpi eq, %55, %58 : vector<8x16xi32>
    %60 = arith.select %59, %6, %53 : vector<8x16xi1>, vector<8x16xf32>
    %c-2147483648_i32_21 = arith.constant -2147483648 : i32
    %61 = vector.broadcast %c-2147483648_i32_21 : i32 to vector<8x16xi32>
    %62 = arith.select %59, %61, %55 : vector<8x16xi1>, vector<8x16xi32>
    %cst_22 = arith.constant dense<-2147483648> : vector<8xi32>
    %63 = vector.multi_reduction <maxsi>, %62, %cst_22 [1] : vector<8x16xi32> to vector<8xi32>
    %64 = vector.shape_cast %63 : vector<8xi32> to vector<8x1xi32>
    %65 = vector.broadcast %64 : vector<8x1xi32> to vector<8x16xi32>
    %66 = arith.cmpi eq, %62, %65 : vector<8x16xi32>
    %67 = arith.select %66, %6, %60 : vector<8x16xi1>, vector<8x16xf32>
    %c-2147483648_i32_23 = arith.constant -2147483648 : i32
    %68 = vector.broadcast %c-2147483648_i32_23 : i32 to vector<8x16xi32>
    %69 = arith.select %66, %68, %62 : vector<8x16xi1>, vector<8x16xi32>
    %cst_24 = arith.constant dense<-2147483648> : vector<8xi32>
    %70 = vector.multi_reduction <maxsi>, %69, %cst_24 [1] : vector<8x16xi32> to vector<8xi32>
    %71 = vector.shape_cast %70 : vector<8xi32> to vector<8x1xi32>
    %72 = vector.broadcast %71 : vector<8x1xi32> to vector<8x16xi32>
    %73 = arith.cmpi eq, %69, %72 : vector<8x16xi32>
    %74 = arith.select %73, %6, %67 : vector<8x16xi1>, vector<8x16xf32>
    %75 = arith.mulf %74, %74 : vector<8x16xf32>
    %cst_25 = arith.constant dense<0.000000e+00> : vector<8xf32>
    %76 = vector.multi_reduction <add>, %75, %cst_25 [1] : vector<8x16xf32> to vector<8xf32>
    %77 = vector.shape_cast %76 : vector<8xf32> to vector<8x1xf32>
    %78 = math.sqrt %77 : vector<8x1xf32>
    %cst_26 = arith.constant 1.000000e-30 : f32
    %79 = vector.broadcast %cst_26 : f32 to vector<8x1xf32>
    %80 = arith.maximumf %78, %79 : vector<8x1xf32>
    %81 = vector.broadcast %80 : vector<8x1xf32> to vector<8x16xf32>
    %82 = arith.divf %74, %81 : vector<8x16xf32>
    %cst_27 = arith.constant 1.600000e+01 : f32
    %83 = vector.broadcast %cst_27 : f32 to vector<8x16xf32>
    %84 = arith.mulf %82, %83 : vector<8x16xf32>
    %cst_28 = arith.constant dense<0xFF800000> : vector<8xf32>
    %85 = vector.multi_reduction <maximumf>, %84, %cst_28 [1] : vector<8x16xf32> to vector<8xf32>
    %86 = vector.shape_cast %85 : vector<8xf32> to vector<8x1xf32>
    %87 = vector.broadcast %86 : vector<8x1xf32> to vector<8x16xf32>
    %88 = arith.subf %84, %87 : vector<8x16xf32>
    %89 = math.exp %88 : vector<8x16xf32>
    %cst_29 = arith.constant dense<0.000000e+00> : vector<8xf32>
    %90 = vector.multi_reduction <add>, %89, %cst_29 [1] : vector<8x16xf32> to vector<8xf32>
    %91 = vector.shape_cast %90 : vector<8xf32> to vector<8x1xf32>
    %92 = tpu.reciprocal %91 : vector<8x1xf32> -> vector<8x1xf32>
    %93 = vector.broadcast %92 : vector<8x1xf32> to vector<8x16xf32>
    %94 = arith.mulf %89, %93 : vector<8x16xf32>
    %95 = arith.truncf %94 : vector<8x16xf32> to vector<8x16xbf16>
    %cst_30 = arith.constant dense<0.000000e+00> : vector<8x32xf32>
    %96 = tpu.matmul %95, %5, %cst_30 {dimension_numbers = #tpu.dot_dimension_numbers<[1], [0], [0], [1], [0, 0, 1, 1], [], []>} : vector<8x16xbf16>, vector<16x32xbf16>, vector<8x32xf32> -> vector<8x32xf32>
    %97 = arith.truncf %96 : vector<8x32xf32> to vector<8x32xbf16>
    %cst_31 = arith.constant dense<0.000000e+00> : vector<8x32xf32>
    %98 = tpu.matmul %97, %1, %cst_31 {dimension_numbers = #tpu.dot_dimension_numbers<[1], [0], [0], [1], [0, 0, 1, 1], [], []>} : vector<8x32xbf16>, vector<32x32xbf16>, vector<8x32xf32> -> vector<8x32xf32>
    %99 = vector.broadcast %2 : vector<1x32xf32> to vector<8x32xf32>
    %100 = arith.addf %98, %99 : vector<8x32xf32>
    %c0_32 = arith.constant 0 : index
    %c0_33 = arith.constant 0 : index
    %c0_34 = arith.constant 0 : index
    %101 = vector.load %arg5[%c0_32, %c0_33, %c0_34] : memref<1x8x32xf32, #tpu.memory_space<vmem>>, vector<1x8x32xf32>
    %102 = vector.shape_cast %101 : vector<1x8x32xf32> to vector<8x32xf32>
    %103 = vector.shape_cast %100 : vector<8x32xf32> to vector<1x8x32xf32>
    tpu.vector_store %arg5[%c0_32, %c0_33, %c0_34], %103 {strides = array<i32>} : memref<1x8x32xf32, #tpu.memory_space<vmem>>, vector<1x8x32xf32>,
    return
  }
  func.func @transform_0(%arg0: i32) -> (i32, i32, i32) {
    %c0_i32 = arith.constant 0 : i32
    %c0_i32_0 = arith.constant 0 : i32
    %c0_i32_1 = arith.constant 0 : i32
    return %arg0, %c0_i32, %c0_i32_0 : i32, i32, i32
  }
  func.func @transform_1(%arg0: i32) -> (i32, i32) {
    %c0_i32 = arith.constant 0 : i32
    %c0_i32_0 = arith.constant 0 : i32
    %c0_i32_1 = arith.constant 0 : i32
    return %c0_i32, %c0_i32_0 : i32, i32
  }
  func.func @transform_2(%arg0: i32) -> (i32, i32) {
    %c0_i32 = arith.constant 0 : i32
    %c0_i32_0 = arith.constant 0 : i32
    %c0_i32_1 = arith.constant 0 : i32
    return %c0_i32, %c0_i32_0 : i32, i32
  }
  func.func @transform_3(%arg0: i32) -> (i32, i32) {
    %c0_i32 = arith.constant 0 : i32
    %c0_i32_0 = arith.constant 0 : i32
    %c0_i32_1 = arith.constant 0 : i32
    return %c0_i32, %c0_i32_0 : i32, i32
  }
  func.func @transform_4(%arg0: i32) -> (i32, i32, i32) {
    %c0_i32 = arith.constant 0 : i32
    %c0_i32_0 = arith.constant 0 : i32
    %c0_i32_1 = arith.constant 0 : i32
    return %arg0, %c0_i32, %c0_i32_0 : i32, i32, i32
  }
}

</mosaic_0001>

<llo_original>
// kernel: kla_forward.1
$region0: #{kla_forward.1}
  #allocation0 [shape = 'u32[]', space=smem, size = 0x4, offset = 0x4, fixed_abs, tag = 'smem constant byte address 0x4 - core index']
  #allocation1 [shape = 'u32[144,128]{1,0:T(1,128)}', space=vmem, size = 0x12000, scoped, tag = 'internal scratch']
  %s0 = inlined_call_operand.vmem [shape: f32[2,16,32], index: 0, kind: input, shape index: {}]
  %s1 = inlined_call_operand.vmem [shape: f32[8,32], index: 1, kind: input, shape index: {}]
  %s2 = inlined_call_operand.vmem [shape: bf16[32,32], index: 2, kind: input, shape index: {}]
  %s3 = inlined_call_operand.vmem [shape: f32[1,32], index: 3, kind: input, shape index: {}]
  %s4 = inlined_call_operand.hbm [shape: f32[2,8,32], index: 4, kind: output, shape index: {}]
  %s5 = sld [smem:[#allocation0]]
  $region49: #{kla_forward.1} parent=0
    _
  %s7 = ssub.s32 1, %s5
  %s8 = scalar_select 0, %s7, %s5
  $region1: #{kla_forward.1} parent=0
    #allocation2 [shape = 'u8[8192]{0}', space=vmem, size = 0x2000, scoped, tag = 'output window, operand 0']
    #allocation3 [shape = 's32[2]{0}', space=sflag, size = 0x8, scoped, tag = 'scoped memory for kla_forward.1']
    %9 = vsyncpa [#allocation3], 0
    %s10 = scalar_lea.sflag [#allocation3], 1
    %11 = vsyncpa %s10, 0
    loop: start=0, step=1, limit=4
    $region2: #{kla_forward.1} parent=1 // loop_pre_header
      _
    $region3: #{kla_forward.1} parent=1 // loop_header
      %s13 = sphi 0, %s17
      %p14 = scmp.ge.s32.totalorder %s13, 4
      %s23 = sphi 0, %s25
      %s26 = sphi 0, %s23
      %s27 = sphi 0, %s26
      %s43 = sphi 0, %s27
      %s47 = sphi 0, %s47
      %s49 = sphi 0, %s47
      %s50 = sphi 0, %s49
      %s64 = sphi 0, %s50
      %s68 = sphi 0, %s68
      %s70 = sphi 0, %s68
      %s71 = sphi 0, %s70
      %s85 = sphi 0, %s71
      %s89 = sphi 0, %s89
      %s91 = sphi 0, %s89
      %s92 = sphi 0, %s91
      %s106 = sphi 0, %s92
      %s112 = sphi 0, %s114
      %s115 = sphi 0, %s112
      %s116 = sphi 0, %s115
      %s132 = sphi 0, %s116
    $region4: #{kla_forward.1} parent=1 // loop_header_branch
      %16 = sbr.rel (%p14) target = $region8
    $region5: #{kla_forward.1} parent=1 // loop_body
      %s18 = ssub.s32 %s13, 1
      %s19 = ssub.s32 %s13, 2
      %s20 = sadd.s32 %s13, 1
      %s21 = ssub.s32 %s13, %s20
      %p22 = scmp.eq.s32.totalorder %s21, 0
      %s24 = sadd.s32 %s23, 1
      %s25 = scalar_select %p22, %s23, %s24
      %p28 = pneg %p22
      %p29 = scmp.eq.s32.totalorder %s13, 1
      %p30 = por %p28, %p29
      %p31 = scmp.ne.s32.totalorder %s23, %s26
      %p32 = scmp.eq.s32.totalorder %s13, 0
      %p33 = por %p31, %p32
      %p34 = scmp.ne.s32.totalorder %s23, %s26
      %p35 = scmp.eq.s32.totalorder %s18, 1
      %p36 = por %p34, %p35
      %p37 = scmp.ne.s32.totalorder %s26, %s27
      %p38 = scmp.eq.s32.totalorder %s18, 0
      %p39 = por %p37, %p38
      %p40 = scmp.ne.s32.totalorder %s26, %s27
      %p41 = scmp.eq.s32.totalorder %s19, 1
      %p42 = por %p40, %p41
      %p44 = scmp.ne.s32.totalorder %s27, %s43
      %p45 = scmp.eq.s32.totalorder %s19, 0
      %p46 = por %p44, %p45
      %s48 = sadd.s32 %s47, 1
      %p51 = scmp.eq.s32.totalorder %s13, 1
      %p52 = scmp.ne.s32.totalorder %s47, %s49
      %p53 = scmp.eq.s32.totalorder %s13, 0
      %p54 = por %p52, %p53
      %p55 = scmp.ne.s32.totalorder %s47, %s49
      %p56 = scmp.eq.s32.totalorder %s18, 1
      %p57 = por %p55, %p56
      %p58 = scmp.ne.s32.totalorder %s49, %s50
      %p59 = scmp.eq.s32.totalorder %s18, 0
      %p60 = por %p58, %p59
      %p61 = scmp.ne.s32.totalorder %s49, %s50
      %p62 = scmp.eq.s32.totalorder %s19, 1
      %p63 = por %p61, %p62
      %p65 = scmp.ne.s32.totalorder %s50, %s64
      %p66 = scmp.eq.s32.totalorder %s19, 0
      %p67 = por %p65, %p66
      %s69 = sadd.s32 %s68, 1
      %p72 = scmp.eq.s32.totalorder %s13, 1
      %p73 = scmp.ne.s32.totalorder %s68, %s70
      %p74 = scmp.eq.s32.totalorder %s13, 0
      %p75 = por %p73, %p74
      %p76 = scmp.ne.s32.totalorder %s68, %s70
      %p77 = scmp.eq.s32.totalorder %s18, 1
      %p78 = por %p76, %p77
      %p79 = scmp.ne.s32.totalorder %s70, %s71
      %p80 = scmp.eq.s32.totalorder %s18, 0
      %p81 = por %p79, %p80
      %p82 = scmp.ne.s32.totalorder %s70, %s71
      %p83 = scmp.eq.s32.totalorder %s19, 1
      %p84 = por %p82, %p83
      %p86 = scmp.ne.s32.totalorder %s71, %s85
      %p87 = scmp.eq.s32.totalorder %s19, 0
      %p88 = por %p86, %p87
      %s90 = sadd.s32 %s89, 1
      %p93 = scmp.eq.s32.totalorder %s13, 1
      %p94 = scmp.ne.s32.totalorder %s89, %s91
      %p95 = scmp.eq.s32.totalorder %s13, 0
      %p96 = por %p94, %p95
      %p97 = scmp.ne.s32.totalorder %s89, %s91
      %p98 = scmp.eq.s32.totalorder %s18, 1
      %p99 = por %p97, %p98
      %p100 = scmp.ne.s32.totalorder %s91, %s92
      %p101 = scmp.eq.s32.totalorder %s18, 0
      %p102 = por %p100, %p101
      %p103 = scmp.ne.s32.totalorder %s91, %s92
      %p104 = scmp.eq.s32.totalorder %s19, 1
      %p105 = por %p103, %p104
      %p107 = scmp.ne.s32.totalorder %s92, %s106
      %p108 = scmp.eq.s32.totalorder %s19, 0
      %p109 = por %p107, %p108
      %s110 = ssub.s32 %s13, %s20
      %p111 = scmp.eq.s32.totalorder %s110, 0
      %s113 = sadd.s32 %s112, 1
      %s114 = scalar_select %p111, %s112, %s113
      %p117 = pneg %p111
      %p118 = scmp.eq.s32.totalorder %s13, 1
      %p119 = por %p117, %p118
      %p120 = scmp.ne.s32.totalorder %s112, %s115
      %p121 = scmp.eq.s32.totalorder %s13, 0
      %p122 = por %p120, %p121
      %p123 = scmp.ne.s32.totalorder %s112, %s115
      %p124 = scmp.eq.s32.totalorder %s18, 1
      %p125 = por %p123, %p124
      %p126 = scmp.ne.s32.totalorder %s115, %s116
      %p127 = scmp.eq.s32.totalorder %s18, 0
      %p128 = por %p126, %p127
      %p129 = scmp.ne.s32.totalorder %s115, %s116
      %p130 = scmp.eq.s32.totalorder %s19, 1
      %p131 = por %p129, %p130
      %p133 = scmp.ne.s32.totalorder %s116, %s132
      %p134 = scmp.eq.s32.totalorder %s19, 0
      %p135 = por %p133, %p134
      %p136 = scmp.le.s32.totalorder 1, %s13
      %p137 = scmp.lt.s32.totalorder %s13, 3
      %p138 = pnand %p136, %p137
      %p139 = pneg %p138
      // Predicated region
      $region9: #{kla_forward.1} parent=5 // pred_check
        _
      $region10: #{kla_forward.1} parent=5 // pred_check_branch
        %141 = sbr.rel (%p138) target = $region12
      $region11: #{kla_forward.1} parent=5 // pred_region
        %s142 = ssub.s32 %s13, 1
        // Predicated region
        $region13: #{kla_forward.1} parent=11 // pred_check
          %p143 = pneg %p60
        $region14: #{kla_forward.1} parent=11 // pred_check_branch
          %145 = sbr.rel (%p143) target = $region16
        $region15: #{kla_forward.1} parent=11 // pred_region
          _
        $region16: #{kla_forward.1} parent=11 // pred_fallthru
          _
        // Predicated region
        $region17: #{kla_forward.1} parent=11 // pred_check
          %p146 = pneg %p81
        $region18: #{kla_forward.1} parent=11 // pred_check_branch
          %148 = sbr.rel (%p146) target = $region20
        $region19: #{kla_forward.1} parent=11 // pred_region
          _
        $region20: #{kla_forward.1} parent=11 // pred_fallthru
          _
        // Predicated region
        $region21: #{kla_forward.1} parent=11 // pred_check
          %p149 = pneg %p102
        $region22: #{kla_forward.1} parent=11 // pred_check_branch
          %151 = sbr.rel (%p149) target = $region24
        $region23: #{kla_forward.1} parent=11 // pred_region
          _
        $region24: #{kla_forward.1} parent=11 // pred_fallthru
          _
      $region12: #{kla_forward.1} parent=5 // pred_fallthru
        _
      %p152 = scmp.lt.s32.totalorder %s13, 2
      // Predicated region
      $region25: #{kla_forward.1} parent=5 // pred_check
        %p153 = pneg %p152
      $region26: #{kla_forward.1} parent=5 // pred_check_branch
        %155 = sbr.rel (%p153) target = $region28
      $region27: #{kla_forward.1} parent=5 // pred_region
        // Predicated region
        $region29: #{kla_forward.1} parent=27 // pred_check
          %p156 = pneg %p33
        $region30: #{kla_forward.1} parent=27 // pred_check_branch
          %158 = sbr.rel (%p156) target = $region32
        $region31: #{kla_forward.1} parent=27 // pred_region
          %p159 = scmp.lt.s32.totalorder %s13, 1
          %s160 = scalar_select %p159, %s13, 1
          %s161 = smul.addr %s160, 2
          %s162 = smul.addr %s161, 8
          %s163 = scalar_lea.vmem %s0, %s162
        $region32: #{kla_forward.1} parent=27 // pred_fallthru
          _
      $region28: #{kla_forward.1} parent=5 // pred_fallthru
        _
      %p164 = scmp.le.s32.totalorder 1, %s13
      %p165 = scmp.lt.s32.totalorder %s13, 3
      %p166 = pnand %p164, %p165
      %p167 = pneg %p166
      // Predicated region
      $region33: #{kla_forward.1} parent=5 // pred_check
        _
      $region34: #{kla_forward.1} parent=5 // pred_check_branch
        %169 = sbr.rel (%p166) target = $region36
      $region35: #{kla_forward.1} parent=5 // pred_region
        %s170 = ssub.s32 %s13, 1
        %p171 = scmp.lt.s32.totalorder %s18, 1
        %s172 = scalar_select %p171, %s18, 1
        %s173 = smul.addr %s172, 2
        %s174 = smul.addr %s173, 8
        %s175 = scalar_lea.vmem %s0, %s174
        %p176 = pneg %p39
        %p177 = pneg %p36
        %p178 = pneg %p60
        %p179 = pneg %p57
        %p180 = pneg %p81
        %p181 = pneg %p78
        %p182 = pneg %p102
        %p183 = pneg %p99
        %p184 = pneg %p128
        %p185 = pneg %p125
        %s186 = sand.u32 %s115, 1
        %s187 = scalar_lea.sflag [#allocation3], %s186
        %s188 = sand.u32 %s115, 1
        %s189 = smul.addr %s188, 8
        %s190 = scalar_lea.vmem [#allocation2], %s189
        %p191 = scmp.lt.s32.totalorder %s18, 1
        %s192 = scalar_select %p191, %s18, 1
        %s193 = smul.addr %s192, 2
        %s194 = smul.addr %s193, 8
        %s195 = scalar_lea.vmem %s0, %s194
        %v197 = vld [vmem:[%s1] sm:$0xff]
        %v198 = vld [vmem:[%s2] sm:$0xf]
        %v199 = vld [vmem:[%s2 + $0x4] sm:$0xf]
        %v200 = vld [vmem:[%s2 + $0x8] sm:$0xf]
        %v201 = vld [vmem:[%s2 + $0xc] sm:$0xf]
        %v202 = vld [vmem:[%s3] sm:$0x1]
        %v203 = vld [vmem:[%s195] sm:$0xff]
        %v204 = vld [vmem:[%s195 + $0x8] sm:$0xff]
        %v205 = vpack.c.bf16 %v204, %v203
        %vm206 = vcmask 261120
        %v208 = vsel %vm206, %v197, 0
        %v211 = vsel %vm206, %v203, 0
        %v214 = vsel %vm206, %v204, 0
        %216 = vmatprep.subr.mxu0 0.0
        %217 = vmatpush1.xpose.msra.mxu0 %v211
        %218 = vmatprep.subr.mxu0 0.0
        %219 = vmatpush1.xpose.msra.mxu0 %v214
        %220 = vmatprep.subr.mxu0 0.0
        %221 = vmatpush1.xpose.msra.mxu0 0.0
        %222 = vmatprep.subr.mxu0 0.0
        %223 = vmatpush1.xpose.msra.mxu0 0.0
        %224 = vmatprep.subr.mxu0 0.0
        %225 = vmatpush1.xpose.msra.mxu0 0.0
        %226 = vmatprep.subr.mxu0 0.0
        %227 = vmatpush1.xpose.msra.mxu0 0.0
        %228 = vmatprep.subr.mxu0 0.0
        %229 = vmatpush1.xpose.msra.mxu0 0.0
        %230 = vmatprep.subr.mxu0 0.0
        %231 = vmatpush1.xpose.msra.mxu0 0.0
        %232 = vmatprep.subr.mxu0 0.0
        %233 = vmatpush1.xpose.msra.mxu0 0.0
        %234 = vmatprep.subr.mxu0 0.0
        %235 = vmatpush1.xpose.msra.mxu0 0.0
        %236 = vmatprep.subr.mxu0 0.0
        %237 = vmatpush1.xpose.msra.mxu0 0.0
        %238 = vmatprep.subr.mxu0 0.0
        %239 = vmatpush1.xpose.msra.mxu0 0.0
        %240 = vmatprep.subr.mxu0 0.0
        %241 = vmatpush1.xpose.msra.mxu0 0.0
        %242 = vmatprep.subr.mxu0 0.0
        %243 = vmatpush1.xpose.msra.mxu0 0.0
        %244 = vmatprep.subr.mxu0 0.0
        %245 = vmatpush1.xpose.msra.mxu0 0.0
        %246 = vmatprep.subr.mxu0 0.0
        %247 = vmatpush1.xpose.msra.mxu0 0.0
        %248 = vmatprep.subr.mxu0 0.0
        %249 = vmatpush1.xpose.msra.mxu0 0.0
        %250 = vmatprep.subr.mxu0 0.0
        %251 = vmatpush1.xpose.msra.mxu0 0.0
        %252 = vmatprep.subr.mxu0 0.0
        %253 = vmatpush1.xpose.msra.mxu0 0.0
        %254 = vmatprep.subr.mxu0 0.0
        %255 = vmatpush1.xpose.msra.mxu0 0.0
        %256 = vmatprep.subr.mxu0 0.0
        %257 = vmatpush1.xpose.msra.mxu0 0.0
        %258 = vmatprep.subr.mxu0 0.0
        %259 = vmatpush1.xpose.msra.mxu0 0.0
        %260 = vmatprep.subr.mxu0 0.0
        %261 = vmatpush1.xpose.msra.mxu0 0.0
        %262 = vmatprep.subr.mxu0 0.0
        %263 = vmatpush1.xpose.msra.mxu0 0.0
        %264 = vmatprep.subr.mxu0 0.0
        %265 = vmatpush1.xpose.msra.mxu0 0.0
        %266 = vmatprep.subr.mxu0 0.0
        %267 = vmatpush1.xpose.msra.mxu0 0.0
        %268 = vmatprep.subr.mxu0 0.0
        %269 = vmatpush1.xpose.msra.mxu0 0.0
        %270 = vmatprep.subr.mxu0 0.0
        %271 = vmatpush1.xpose.msra.mxu0 0.0
        %272 = vmatprep.subr.mxu0 0.0
        %273 = vmatpush1.xpose.msra.mxu0 0.0
        %274 = vmatprep.subr.mxu0 0.0
        %275 = vmatpush1.xpose.msra.mxu0 0.0
        %276 = vmatprep.subr.mxu0 0.0
        %277 = vmatpush1.xpose.msra.mxu0 0.0
        %278 = vmatprep.subr.mxu0 0.0
        %279 = vmatpush1.xpose.msra.mxu0 0.0
        %280 = vmatprep.mubr.f32.mxu0 0.0
        %281 = vmatmul.mubr.f32.gmra.mrb[0].mxu0 %v208
        %v282 = vpop.f32.mrb[0].mxu0
        %v283 = vadd.f32 0.0, %v282
        %v284 = vpop.f32.mrb[0].mxu0
        %285 = vdwg.mxu0
        %v287 = vshra.s32 %v283, 31
        %v288 = vand.u32 %v287, 2147483647
        %v289 = vxor.u32 %v283, %v288
        %vm290 = vcmask 130048
        %v291 = vsel %vm290, %v289, 2147483648
        %v292 = vand.u32 %v291, 65535
        %v293 = vshra.s32 %v291, 16
        %v294 = vcvt.s32.f32 %v292
        %v295 = vcvt.s32.f32 %v293
        %296 = vmax.xlane.f32.xlu0 %v295
        %v297 = vpop.xlane.xlu0 %296
        %vm298 = vcmp.eq.f32.partialorder %v295, %v297
        %v299 = vsel %vm298, %v294, -inf
        %300 = vmax.xlane.f32.xlu0 %v299
        %v301 = vpop.xlane.xlu0 %300
        %v302 = vcvt.f32.s32 %v301
        %v303 = vcvt.f32.s32 %v297
        %v304 = vshll.u32 %v303, 16
        %v305 = vadd.s32 %v304, %v302
        %vm306 = vcmp.eq.s32.totalorder %v289, %v305
        %v307 = vsel %vm306, %v283, 0.0
        %v308 = vsel %vm306, 2147483648, %v289
        %v309 = vsel %vm290, %v308, 2147483648
        %v310 = vand.u32 %v309, 65535
        %v311 = vshra.s32 %v309, 16
        %v312 = vcvt.s32.f32 %v310
        %v313 = vcvt.s32.f32 %v311
        %314 = vmax.xlane.f32.xlu0 %v313
        %v315 = vpop.xlane.xlu0 %314
        %vm316 = vcmp.eq.f32.partialorder %v313, %v315
        %v317 = vsel %vm316, %v312, -inf
        %318 = vmax.xlane.f32.xlu0 %v317
        %v319 = vpop.xlane.xlu0 %318
        %v320 = vcvt.f32.s32 %v319
        %v321 = vcvt.f32.s32 %v315
        %v322 = vshll.u32 %v321, 16
        %v323 = vadd.s32 %v322, %v320
        %vm324 = vcmp.eq.s32.totalorder %v308, %v323
        %v325 = vsel %vm324, %v283, %v307
        %v326 = vsel %vm324, 2147483648, %v308
        %v327 = vsel %vm290, %v326, 2147483648
        %v328 = vand.u32 %v327, 65535
        %v329 = vshra.s32 %v327, 16
        %v330 = vcvt.s32.f32 %v328
        %v331 = vcvt.s32.f32 %v329
        %332 = vmax.xlane.f32.xlu0 %v331
        %v333 = vpop.xlane.xlu0 %332
        %vm334 = vcmp.eq.f32.partialorder %v331, %v333
        %v335 = vsel %vm334, %v330, -inf
        %336 = vmax.xlane.f32.xlu0 %v335
        %v337 = vpop.xlane.xlu0 %336
        %v338 = vcvt.f32.s32 %v337
        %v339 = vcvt.f32.s32 %v333
        %v340 = vshll.u32 %v339, 16
        %v341 = vadd.s32 %v340, %v338
        %vm342 = vcmp.eq.s32.totalorder %v326, %v341
        %v343 = vsel %vm342, %v283, %v325
        %v344 = vsel %vm342, 2147483648, %v326
        %v345 = vsel %vm290, %v344, 2147483648
        %v346 = vand.u32 %v345, 65535
        %v347 = vshra.s32 %v345, 16
        %v348 = vcvt.s32.f32 %v346
        %v349 = vcvt.s32.f32 %v347
        %350 = vmax.xlane.f32.xlu0 %v349
        %v351 = vpop.xlane.xlu0 %350
        %vm352 = vcmp.eq.f32.partialorder %v349, %v351
        %v353 = vsel %vm352, %v348, -inf
        %354 = vmax.xlane.f32.xlu0 %v353
        %v355 = vpop.xlane.xlu0 %354
        %v356 = vcvt.f32.s32 %v355
        %v357 = vcvt.f32.s32 %v351
        %v358 = vshll.u32 %v357, 16
        %v359 = vadd.s32 %v358, %v356
        %vm360 = vcmp.eq.s32.totalorder %v344, %v359
        %v361 = vsel %vm360, %v283, %v343
        %v362 = vsel %vm360, 2147483648, %v344
        %v363 = vsel %vm290, %v362, 2147483648
        %v364 = vand.u32 %v363, 65535
        %v365 = vshra.s32 %v363, 16
        %v366 = vcvt.s32.f32 %v364
        %v367 = vcvt.s32.f32 %v365
        %368 = vmax.xlane.f32.xlu0 %v367
        %v369 = vpop.xlane.xlu0 %368
        %vm370 = vcmp.eq.f32.partialorder %v367, %v369
        %v371 = vsel %vm370, %v366, -inf
        %372 = vmax.xlane.f32.xlu0 %v371
        %v373 = vpop.xlane.xlu0 %372
        %v374 = vcvt.f32.s32 %v373
        %v375 = vcvt.f32.s32 %v369
        %v376 = vshll.u32 %v375, 16
        %v377 = vadd.s32 %v376, %v374
        %vm378 = vcmp.eq.s32.totalorder %v362, %v377
        %v379 = vsel %vm378, %v283, %v361
        %v380 = vsel %vm378, 2147483648, %v362
        %v381 = vsel %vm290, %v380, 2147483648
        %v382 = vand.u32 %v381, 65535
        %v383 = vshra.s32 %v381, 16
        %v384 = vcvt.s32.f32 %v382
        %v385 = vcvt.s32.f32 %v383
        %386 = vmax.xlane.f32.xlu0 %v385
        %v387 = vpop.xlane.xlu0 %386
        %vm388 = vcmp.eq.f32.partialorder %v385, %v387
        %v389 = vsel %vm388, %v384, -inf
        %390 = vmax.xlane.f32.xlu0 %v389
        %v391 = vpop.xlane.xlu0 %390
        %v392 = vcvt.f32.s32 %v391
        %v393 = vcvt.f32.s32 %v387
        %v394 = vshll.u32 %v393, 16
        %v395 = vadd.s32 %v394, %v392
        %vm396 = vcmp.eq.s32.totalorder %v380, %v395
        %v397 = vsel %vm396, %v283, %v379
        %v398 = vsel %vm396, 2147483648, %v380
        %v399 = vsel %vm290, %v398, 2147483648
        %v400 = vand.u32 %v399, 65535
        %v401 = vshra.s32 %v399, 16
        %v402 = vcvt.s32.f32 %v400
        %v403 = vcvt.s32.f32 %v401
        %404 = vmax.xlane.f32.xlu0 %v403
        %v405 = vpop.xlane.xlu0 %404
        %vm406 = vcmp.eq.f32.partialorder %v403, %v405
        %v407 = vsel %vm406, %v402, -inf
        %408 = vmax.xlane.f32.xlu0 %v407
        %v409 = vpop.xlane.xlu0 %408
        %v410 = vcvt.f32.s32 %v409
        %v411 = vcvt.f32.s32 %v405
        %v412 = vshll.u32 %v411, 16
        %v413 = vadd.s32 %v412, %v410
        %vm414 = vcmp.eq.s32.totalorder %v398, %v413
        %v415 = vsel %vm414, %v283, %v397
        %v416 = vsel %vm414, 2147483648, %v398
        %v417 = vsel %vm290, %v416, 2147483648
        %v418 = vand.u32 %v417, 65535
        %v419 = vshra.s32 %v417, 16
        %v420 = vcvt.s32.f32 %v418
        %v421 = vcvt.s32.f32 %v419
        %422 = vmax.xlane.f32.xlu0 %v421
        %v423 = vpop.xlane.xlu0 %422
        %vm424 = vcmp.eq.f32.partialorder %v421, %v423
        %v425 = vsel %vm424, %v420, -inf
        %426 = vmax.xlane.f32.xlu0 %v425
        %v427 = vpop.xlane.xlu0 %426
        %v428 = vcvt.f32.s32 %v427
        %v429 = vcvt.f32.s32 %v423
        %v430 = vshll.u32 %v429, 16
        %v431 = vadd.s32 %v430, %v428
        %vm432 = vcmp.eq.s32.totalorder %v416, %v431
        %v433 = vsel %vm432, %v283, %v415
        %v434 = vsel %vm432, 2147483648, %v416
        %v435 = vsel %vm290, %v434, 2147483648
        %v436 = vand.u32 %v435, 65535
        %v437 = vshra.s32 %v435, 16
        %v438 = vcvt.s32.f32 %v436
        %v439 = vcvt.s32.f32 %v437
        %440 = vmax.xlane.f32.xlu0 %v439
        %v441 = vpop.xlane.xlu0 %440
        %vm442 = vcmp.eq.f32.partialorder %v439, %v441
        %v443 = vsel %vm442, %v438, -inf
        %444 = vmax.xlane.f32.xlu0 %v443
        %v445 = vpop.xlane.xlu0 %444
        %v446 = vcvt.f32.s32 %v445
        %v447 = vcvt.f32.s32 %v441
        %v448 = vshll.u32 %v447, 16
        %v449 = vadd.s32 %v448, %v446
        %vm450 = vcmp.eq.s32.totalorder %v434, %v449
        %v451 = vsel %vm450, %v283, %v433
        %v452 = vmul.f32 %v451, %v451
        %v453 = vsel %vm290, %v452, 0.0
        %454 = vadd.xlane.f32.xlu0 %v453
        %v455 = vpop.xlane.xlu0 %454
        %v456 = vrsqrt.pop %v455
        %v457 = vmul.f32 %v455, %v456
        %vm458 = vcmp.eq.f32.partialorder %v455, inf
        %v459 = vsel %vm458, %v455, %v457
        %vm460 = vcmp.eq.f32.partialorder %v455, 0.0
        %v461 = vand.u32 %v455, 2147483648
        %v462 = vsel %vm460, %v461, %v459
        %v463 = vmax.f32 %v462, 1e-30
        %v464 = vrcp.pop %v463
        %v465 = vmul.f32 %v451, %v464
        %v466 = vmul.f32 %v465, 16.0
        %v467 = vsel %vm290, %v466, -inf
        %468 = vmax.xlane.f32.xlu0 %v467
        %v469 = vpop.xlane.xlu0 %468
        %v470 = vsub.f32 %v466, %v469
        %v471 = vmul.f32 %v470, 1.442695
        %v472 = vpow.pop %v471
        %v473 = vsel %vm290, %v472, 0.0
        %474 = vadd.xlane.f32.xlu0 %v473
        %v475 = vpop.xlane.xlu0 %474
        %v476 = vrcp.pop %v475
        %v477 = vmul.f32 %v472, %v476
        %v478 = vpack.c.bf16 %v477, %v477
        %v480 = vsel %vm290, %v478, 0
        %482 = vmatprep.subr.bf16.mxu0 0
        %483 = vmatpush1.bf16.msra.mxu0 %v205
        %484 = vmatprep.subr.bf16.mxu0 0
        %485 = vmatpush1.bf16.msra.mxu0 0
        %486 = vmatprep.subr.bf16.mxu0 0
        %487 = vmatpush1.bf16.msra.mxu0 0
        %488 = vmatprep.subr.bf16.mxu0 0
        %489 = vmatpush1.bf16.msra.mxu0 0
        %490 = vmatprep.subr.bf16.mxu0 0
        %491 = vmatpush1.bf16.msra.mxu0 0
        %492 = vmatprep.subr.bf16.mxu0 0
        %493 = vmatpush1.bf16.msra.mxu0 0
        %494 = vmatprep.subr.bf16.mxu0 0
        %495 = vmatpush1.bf16.msra.mxu0 0
        %496 = vmatprep.subr.bf16.mxu0 0
        %497 = vmatpush1.bf16.msra.mxu0 0
        %498 = vmatprep.subr.bf16.mxu0 0
        %499 = vmatpush1.bf16.msra.mxu0 0
        %500 = vmatprep.subr.bf16.mxu0 0
        %501 = vmatpush1.bf16.msra.mxu0 0
        %502 = vmatprep.subr.bf16.mxu0 0
        %503 = vmatpush1.bf16.msra.mxu0 0
        %504 = vmatprep.subr.bf16.mxu0 0
        %505 = vmatpush1.bf16.msra.mxu0 0
        %506 = vmatprep.subr.bf16.mxu0 0
        %507 = vmatpush1.bf16.msra.mxu0 0
        %508 = vmatprep.subr.bf16.mxu0 0
        %509 = vmatpush1.bf16.msra.mxu0 0
        %510 = vmatprep.subr.bf16.mxu0 0
        %511 = vmatpush1.bf16.msra.mxu0 0
        %512 = vmatprep.subr.bf16.mxu0 0
        %513 = vmatpush1.bf16.msra.mxu0 0
        %514 = vmatprep.mubr.bf16.mxu0 0
        %515 = vmatmul.mubr.bf16.gmra.mrb[0].mxu0 %v480
        %v516 = vpop.f32.mrb[0].mxu0
        %v517 = vadd.f32 0.0, %v516
        %v518 = vpop.f32.mrb[0].mxu0
        %v519 = vpop.f32.mrb[0].mxu0
        %v520 = vpop.f32.mrb[0].mxu0
        %521 = vdwg.mxu0
        %v522 = vpack.c.bf16 %v517, %v517
        %v524 = vlaneseq
        %v525 = vshrl.u32 %v524, 7
        %v526 = vsub.s32 0, %v525
        %v527 = vrot.slane %v202, %v526
        %v533 = vunpack.c.l.b16 %v198
        %v534 = vunpack.c.l.b16 %v199
        %v535 = vunpack.c.l.b16 %v200
        %v536 = vunpack.c.l.b16 %v201
        %v537 = vpack.c.b16 %v534, %v533
        %v538 = vpack.c.b16 %v536, %v535
        %v542 = vsel %vm206, %v522, 0
        %544 = vmatprep.subr.bf16.mxu0 0
        %545 = vmatpush1.bf16.msra.mxu0 %v537
        %546 = vmatprep.subr.bf16.mxu0 0
        %547 = vmatpush1.bf16.msra.mxu0 %v538
        %548 = vmatprep.subr.bf16.mxu0 0
        %549 = vmatpush1.bf16.msra.mxu0 0
        %550 = vmatprep.subr.bf16.mxu0 0
        %551 = vmatpush1.bf16.msra.mxu0 0
        %552 = vmatprep.subr.bf16.mxu0 0
        %553 = vmatpush1.bf16.msra.mxu0 0
        %554 = vmatprep.subr.bf16.mxu0 0
        %555 = vmatpush1.bf16.msra.mxu0 0
        %556 = vmatprep.subr.bf16.mxu0 0
        %557 = vmatpush1.bf16.msra.mxu0 0
        %558 = vmatprep.subr.bf16.mxu0 0
        %559 = vmatpush1.bf16.msra.mxu0 0
        %560 = vmatprep.subr.bf16.mxu0 0
        %561 = vmatpush1.bf16.msra.mxu0 0
        %562 = vmatprep.subr.bf16.mxu0 0
        %563 = vmatpush1.bf16.msra.mxu0 0
        %564 = vmatprep.subr.bf16.mxu0 0
        %565 = vmatpush1.bf16.msra.mxu0 0
        %566 = vmatprep.subr.bf16.mxu0 0
        %567 = vmatpush1.bf16.msra.mxu0 0
        %568 = vmatprep.subr.bf16.mxu0 0
        %569 = vmatpush1.bf16.msra.mxu0 0
        %570 = vmatprep.subr.bf16.mxu0 0
        %571 = vmatpush1.bf16.msra.mxu0 0
        %572 = vmatprep.subr.bf16.mxu0 0
        %573 = vmatpush1.bf16.msra.mxu0 0
        %574 = vmatprep.subr.bf16.mxu0 0
        %575 = vmatpush1.bf16.msra.mxu0 0
        %576 = vmatprep.mubr.bf16.mxu0 0
        %577 = vmatmul.mubr.bf16.gmra.mrb[0].mxu0 %v542
        %v578 = vpop.f32.mrb[0].mxu0
        %v579 = vadd.f32 %v527, %v578
        %v580 = vpop.f32.mrb[0].mxu0
        %v581 = vpop.f32.mrb[0].mxu0
        %v582 = vpop.f32.mrb[0].mxu0
        %583 = vdwg.mxu0
        %584 = vst.msk [vmem:[%s190] sm:$0xff] %vm206, %v579
        %s585 = sand.u32 %s115, 1
        %s586 = scalar_lea.sflag [#allocation3], %s585
        %s587 = sand.u32 %s115, 1
        %s588 = smul.addr %s587, 8
        %s589 = scalar_lea.vmem [#allocation2], %s588
        // Predicated region
        $region37: #{kla_forward.1} parent=35 // pred_check
          %p590 = pneg %p125
        $region38: #{kla_forward.1} parent=35 // pred_check_branch
          %592 = sbr.rel (%p590) target = $region40
        $region39: #{kla_forward.1} parent=35 // pred_region
          %s594 = ssub.s32 128, 128
          %595 = vsyncadd %s586, %s594
          %s596 = smul.addr %s18, 128
          %s597 = scalar_lea.hbm %s4, %s596
          %s599 = sshll.u32 %s589, 4
          %s600 = int_to_ptr.vmem [resolvable:$true] %s599
          %602 = dma.vmem_to_hbm [thread:$0]  %s600, 128, %s597, %s586
        $region40: #{kla_forward.1} parent=35 // pred_fallthru
          _
      $region36: #{kla_forward.1} parent=5 // pred_fallthru
        _
      %p603 = scmp.le.s32.totalorder 2, %s13
      // Predicated region
      $region41: #{kla_forward.1} parent=5 // pred_check
        %p604 = pneg %p603
      $region42: #{kla_forward.1} parent=5 // pred_check_branch
        %606 = sbr.rel (%p604) target = $region44
      $region43: #{kla_forward.1} parent=5 // pred_region
        %s607 = ssub.s32 %s13, 2
        // Predicated region
        $region45: #{kla_forward.1} parent=43 // pred_check
          %p608 = pneg %p131
        $region46: #{kla_forward.1} parent=43 // pred_check_branch
          %610 = sbr.rel (%p608) target = $region48
        $region47: #{kla_forward.1} parent=43 // pred_region
          %s611 = sand.u32 %s116, 1
          %s612 = scalar_lea.sflag [#allocation3], %s611
          %s613 = sand.u32 %s116, 1
          %s614 = smul.addr %s613, 8
          %s615 = scalar_lea.vmem [#allocation2], %s614
          %616 = dma.done %s612, 128
        $region48: #{kla_forward.1} parent=43 // pred_fallthru
          _
      $region44: #{kla_forward.1} parent=5 // pred_fallthru
        _
    $region6: #{kla_forward.1} parent=1 // loop_footer
      %s17 = sadd.s32 1, %s13
    $region7: #{kla_forward.1} parent=1 // loop_footer_branch
      %12 = sbr.rel target = $region3
    $region8: #{kla_forward.1} parent=1 // loop_exit
      _
    %617 = vsyncpa [#allocation3], 1
    %s618 = scalar_lea.sflag [#allocation3], 1
    %619 = vsyncpa %s618, 1

</llo_original>
